<compile_context>
chip_gen: v7x
topology: tpu7x:2x2x1
jax: 0.10.0
libtpu: 0.0.40
codegen_flags: <defaults>
</compile_context>

<pallas_src>
import functools

import jax
import jax.numpy as jnp
from jax.experimental import pallas as pl
from jax.experimental.pallas import tpu as pltpu

EPS = 1e-5

_CPARAMS = pltpu.CompilerParams(
    dimension_semantics=("parallel",),      # spatial tiles are independent (2 TCs on v7x)
    vmem_limit_bytes=64 * 1024 * 1024,      # explicit scoped-VMEM budget (defaults: 16/32 MiB)
)


def _round_up(x, m):
    return (x + m - 1) // m * m


def _pick_tile(M):
    """Largest lane-tile (multiple of 128) dividing M that still gives >=2 grid steps."""
    for tm in (2048, 1024, 512, 256, 128):
        if M % tm == 0 and M // tm >= 2:
            return tm
    return M


# ------------------------------- Pallas kernels -------------------------------

def _conv_stats_kernel(p_ref, w_ref, y_ref, stats_ref):
    """One spatial tile of the 3x3x3 conv as a single MXU matmul + BN partial stats.

    p_ref    : (27*CIN, TM)   bf16  im2col patch tile (lane-dense on TM)
    w_ref    : (CPAD, 27*CIN) bf16  conv weights (COUT rows padded to CPAD)
    y_ref    : (CPAD, TM)     f32   raw conv output tile (channels-first, lane-dense)
    stats_ref: (1, CPAD, 2)   f32   per-tile per-channel [sum, sum-of-squares]
    """
    y = jnp.dot(w_ref[...], p_ref[...], preferred_element_type=jnp.float32)
    y_ref[...] = y
    s = jnp.sum(y, axis=-1, keepdims=True)          # (CPAD, 1)
    ss = jnp.sum(y * y, axis=-1, keepdims=True)     # (CPAD, 1)
    stats_ref[...] = jnp.concatenate([s, ss], axis=-1)[None]


def _bn_act_kernel(*refs, fuse_residual):
    """Tiled BN-apply (+ optional residual) + ReLU: out = relu(y*scale + shift [+ res])."""
    if fuse_residual:
        y_ref, sc_ref, sh_ref, r_ref, o_ref = refs
    else:
        y_ref, sc_ref, sh_ref, o_ref = refs
        r_ref = None
    out = y_ref[...] * sc_ref[...] + sh_ref[...]
    if fuse_residual:
        out = out + r_ref[...]
    o_ref[...] = jnp.maximum(out, 0.0).astype(o_ref.dtype)


# ----------------------------- host-side wrappers ------------------------------

def _im2col(a_cn, dtype=jnp.bfloat16):
    """a_cn: (C, N, D, H, W) -> (27*C, N*D*H*W) patch matrix (pad=1, stride=1)."""
    C, N, D, H, W = a_cn.shape
    ap = jnp.pad(a_cn.astype(dtype), ((0, 0), (0, 0), (1, 1), (1, 1), (1, 1)))
    taps = [ap[:, :, kd:kd + D, kh:kh + H, kw:kw + W]
            for kd in range(3) for kh in range(3) for kw in range(3)]
    # row index = (kd*9 + kh*3 + kw) * C + ci ; column index = ((n*D + d)*H + h)*W + w
    return jnp.stack(taps, axis=0).reshape(27 * C, N * D * H * W)
    # TODO(synk): for large CIN, build the patch tile inside the kernel from a halo'd
    # channels-first block (manual DMA) to avoid materializing the 27x patch matrix in HBM.


def _conv_pallas(patches, w2d, tm):
    K, M = patches.shape
    CPAD = w2d.shape[0]
    grid = (M // tm,)
    return pl.pallas_call(
        _conv_stats_kernel,
        grid=grid,
        in_specs=[
            pl.BlockSpec((K, tm), lambda i: (0, i)),
            pl.BlockSpec((CPAD, K), lambda i: (0, 0)),
        ],
        out_specs=(
            pl.BlockSpec((CPAD, tm), lambda i: (0, i)),
            pl.BlockSpec((1, CPAD, 2), lambda i: (i, 0, 0)),
        ),
        out_shape=(
            jax.ShapeDtypeStruct((CPAD, M), jnp.float32),
            jax.ShapeDtypeStruct((grid[0], CPAD, 2), jnp.float32),
        ),
        compiler_params=_CPARAMS,
    )(patches, w2d)


def _bn_relu_pallas(y, scale, shift, residual, out_dtype, tm):
    CPAD, M = y.shape
    fuse = residual is not None
    args = [y, scale, shift] + ([residual] if fuse else [])
    in_specs = [
        pl.BlockSpec((CPAD, tm), lambda i: (0, i)),
        pl.BlockSpec((CPAD, 1), lambda i: (0, 0)),
        pl.BlockSpec((CPAD, 1), lambda i: (0, 0)),
    ]
    if fuse:
        in_specs.append(pl.BlockSpec((CPAD, tm), lambda i: (0, i)))
    return pl.pallas_call(
        functools.partial(_bn_act_kernel, fuse_residual=fuse),
        grid=(M // tm,),
        in_specs=in_specs,
        out_specs=pl.BlockSpec((CPAD, tm), lambda i: (0, i)),
        out_shape=jax.ShapeDtypeStruct((CPAD, M), out_dtype),
        compiler_params=_CPARAMS,
    )(*args)


def conv3x3_bn_relu(a_cn, w_oidhw, gamma, beta, residual_flat=None,
                    out_dtype=jnp.float32, tm=None):
    """One conv3x3x3(stride=1,pad=1) + BatchNorm3d(batch stats) [+residual] + ReLU stage.

    a_cn: (CIN, N, D, H, W).  Returns (CPAD, N*D*H*W) channels-first flat activation.
    """
    CIN, N, D, H, W = a_cn.shape
    COUT = w_oidhw.shape[0]
    M = N * D * H * W
    CPAD = _round_up(COUT, 8)
    if tm is None:
        tm = _pick_tile(M)

    patches = _im2col(a_cn, jnp.bfloat16)                               # (27*CIN, M) bf16
    w2d = jnp.transpose(w_oidhw, (0, 2, 3, 4, 1)).reshape(COUT, 27 * CIN)
    w2d = jnp.pad(w2d, ((0, CPAD - COUT), (0, 0))).astype(jnp.bfloat16)  # (CPAD, 27*CIN)

    y, part = _conv_pallas(patches, w2d, tm)                 # (CPAD, M) f32, (T, CPAD, 2)

    # Finalize BN stats (tiny: T*CPAD*2 floats) and fold gamma/beta into scale/shift.
    s = jnp.sum(part[:, :, 0], axis=0)
    ss = jnp.sum(part[:, :, 1], axis=0)
    mean = s / M
    var = ss / M - mean * mean                                # biased variance (training BN)
    g = jnp.pad(gamma.astype(jnp.float32), (0, CPAD - COUT))
    b = jnp.pad(beta.astype(jnp.float32), (0, CPAD - COUT))
    inv = jax.lax.rsqrt(var + EPS)
    scale = (g * inv).reshape(CPAD, 1)
    shift = (b - mean * g * inv).reshape(CPAD, 1)

    return _bn_relu_pallas(y, scale, shift, residual_flat, out_dtype, tm)


def basic_block_forward(x_ncdhw, params):
    """BasicBlock.forward (stride=1, downsample=None): NCDHW in, NCDHW out (f32)."""
    N, C, D, H, W = x_ncdhw.shape
    M = N * D * H * W
    CPAD = _round_up(C, 8)

    x_cn = jnp.transpose(x_ncdhw, (1, 0, 2, 3, 4)).astype(jnp.float32)   # (C, N, D, H, W)

    # stage 1: conv1 -> bn1 -> relu      (intermediate kept bf16, channels-first flat)
    h = conv3x3_bn_relu(x_cn, params["w1"], params["g1"], params["b1"],
                        out_dtype=jnp.bfloat16)
    h_cn = h[:C].reshape(C, N, D, H, W)

    # stage 2: conv2 -> bn2 -> +residual -> relu   (residual added in f32)
    res = jnp.pad(x_cn.reshape(C, M), ((0, CPAD - C), (0, 0)))
    o = conv3x3_bn_relu(h_cn, params["w2"], params["g2"], params["b2"],
                        residual_flat=res, out_dtype=jnp.float32)

    out = o[:C].reshape(C, N, D, H, W)
    return jnp.transpose(out, (1, 0, 2, 3, 4))                           # -> NCDHW


# ------------------------------- pure-JAX reference -------------------------------

def _ref_conv(a, w):
    return jax.lax.conv_general_dilated(
        a, w, window_strides=(1, 1, 1), padding=((1, 1), (1, 1), (1, 1)),
        dimension_numbers=("NCDHW", "OIDHW", "NCDHW"))


def _ref_bn(y, g, b):
    mean = jnp.mean(y, axis=(0, 2, 3, 4), keepdims=True)
    var = jnp.mean(jnp.square(y - mean), axis=(0, 2, 3, 4), keepdims=True)
    return ((y - mean) * jax.lax.rsqrt(var + EPS) * g.reshape(1, -1, 1, 1, 1)
            + b.reshape(1, -1, 1, 1, 1))


def basic_block_ref(x, p):
    out = jnp.maximum(_ref_bn(_ref_conv(x, p["w1"]), p["g1"], p["b1"]), 0.0)
    out = _ref_bn(_ref_conv(out, p["w2"]), p["g2"], p["b2"]) + x
    return jnp.maximum(out, 0.0)


if __name__ == "__main__":
    # BasicBlock(inplanes=4, planes=4, stride=1, downsample=None): residual requires in==out planes.
    N, C, D, H, W = 2, 4, 8, 8, 8

    key = jax.random.PRNGKey(0)
    kx, kw1, kw2, kg1, kb1, kg2, kb2 = jax.random.split(key, 7)

    x = jax.random.normal(kx, (N, C, D, H, W), dtype=jnp.float32)   # NCDHW, like PyTorch

    params = {
        # Conv3d weights in PyTorch OIDHW layout; deterministic synthetic init.
        "w1": 0.1 * jax.random.normal(kw1, (C, C, 3, 3, 3), dtype=jnp.float32),
        "w2": 0.1 * jax.random.normal(kw2, (C, C, 3, 3, 3), dtype=jnp.float32),
        "g1": 1.0 + 0.1 * jax.random.normal(kg1, (C,), dtype=jnp.float32),
        "b1": 0.1 * jax.random.normal(kb1, (C,), dtype=jnp.float32),
        "g2": 1.0 + 0.1 * jax.random.normal(kg2, (C,), dtype=jnp.float32),
        "b2": 0.1 * jax.random.normal(kb2, (C,), dtype=jnp.float32),
    }

    fwd = jax.jit(basic_block_forward)
    out = jax.block_until_ready(fwd(x, params))
    ref = jax.block_until_ready(basic_block_ref(x, params))

    assert out.shape == (N, C, D, H, W), out.shape
    # bf16 MXU operands (f32 accumulation, f32 BN stats) -> loosened tolerance vs f32 reference.
    err = float(jnp.max(jnp.abs(out - ref)))
    assert jnp.allclose(out, ref, atol=5e-2, rtol=5e-2), err

    print("KERNEL_OK")
</pallas_src>

<mosaic_0001>
module attributes {stable_mosaic.version = 11 : i64} {
  func.func @_conv_stats_kernel(%arg0: i32, %arg1: memref<108x512xbf16, #tpu.memory_space<vmem>>, %arg2: memref<8x108xbf16, #tpu.memory_space<vmem>>, %arg3: memref<8x512xf32, #tpu.memory_space<vmem>>, %arg4: memref<1x8x2xf32, #tpu.memory_space<vmem>>) attributes {dimension_semantics = [#tpu.dimension_semantics<parallel>], iteration_bounds = array<i64: 2>, scalar_prefetch = 0 : i64, scratch_operands = 0 : i64, tpu.core_type = #tpu.core_type<tc>, window_params = [{transform_indices = @transform_0, window_bounds = array<i64: 108, 512>}, {pipeline_mode = #tpu.pipeline_mode<synchronous>, transform_indices = @transform_1, window_bounds = array<i64: 8, 108>}, {transform_indices = @transform_2, window_bounds = array<i64: 8, 512>}, {transform_indices = @transform_3, window_bounds = array<i64: 1, 8, 2>}]} {
    %c0 = arith.constant 0 : index
    %c0_0 = arith.constant 0 : index
    %0 = vector.load %arg2[%c0, %c0_0] : memref<8x108xbf16, #tpu.memory_space<vmem>>, vector<8x108xbf16>
    %c0_1 = arith.constant 0 : index
    %c0_2 = arith.constant 0 : index
    %1 = vector.load %arg1[%c0_1, %c0_2] : memref<108x512xbf16, #tpu.memory_space<vmem>>, vector<108x512xbf16>
    %cst = arith.constant dense<0.000000e+00> : vector<8x512xf32>
    %2 = tpu.matmul %0, %1, %cst {dimension_numbers = #tpu.dot_dimension_numbers<[1], [0], [0], [1], [0, 0, 1, 1], [], []>} : vector<8x108xbf16>, vector<108x512xbf16>, vector<8x512xf32> -> vector<8x512xf32>
    %c0_3 = arith.constant 0 : index
    %c0_4 = arith.constant 0 : index
    %3 = vector.load %arg3[%c0_3, %c0_4] : memref<8x512xf32, #tpu.memory_space<vmem>>, vector<8x512xf32>
    tpu.vector_store %arg3[%c0_3, %c0_4], %2 {strides = array<i32>} : memref<8x512xf32, #tpu.memory_space<vmem>>, vector<8x512xf32>,
    %cst_5 = arith.constant dense<0.000000e+00> : vector<8xf32>
    %4 = vector.multi_reduction <add>, %2, %cst_5 [1] : vector<8x512xf32> to vector<8xf32>
    %5 = vector.shape_cast %4 : vector<8xf32> to vector<8x1xf32>
    %6 = arith.mulf %2, %2 : vector<8x512xf32>
    %cst_6 = arith.constant dense<0.000000e+00> : vector<8xf32>
    %7 = vector.multi_reduction <add>, %6, %cst_6 [1] : vector<8x512xf32> to vector<8xf32>
    %8 = vector.shape_cast %7 : vector<8xf32> to vector<8x1xf32>
    %9 = tpu.concatenate %5, %8 in 1 : vector<8x1xf32>, vector<8x1xf32> -> vector<8x2xf32>
    %10 = vector.shape_cast %9 : vector<8x2xf32> to vector<1x8x2xf32>
    %c0_7 = arith.constant 0 : index
    %c0_8 = arith.constant 0 : index
    %c0_9 = arith.constant 0 : index
    %11 = vector.load %arg4[%c0_7, %c0_8, %c0_9] : memref<1x8x2xf32, #tpu.memory_space<vmem>>, vector<1x8x2xf32>
    tpu.vector_store %arg4[%c0_7, %c0_8, %c0_9], %10 {strides = array<i32>} : memref<1x8x2xf32, #tpu.memory_space<vmem>>, vector<1x8x2xf32>,
    return
  }
  func.func @transform_0(%arg0: i32) -> (i32, i32) {
    %c0_i32 = arith.constant 0 : i32
    %c0_i32_0 = arith.constant 0 : i32
    return %c0_i32, %arg0 : i32, i32
  }
  func.func @transform_1(%arg0: i32) -> (i32, i32) {
    %c0_i32 = arith.constant 0 : i32
    %c0_i32_0 = arith.constant 0 : i32
    %c0_i32_1 = arith.constant 0 : i32
    return %c0_i32, %c0_i32_0 : i32, i32
  }
  func.func @transform_2(%arg0: i32) -> (i32, i32) {
    %c0_i32 = arith.constant 0 : i32
    %c0_i32_0 = arith.constant 0 : i32
    return %c0_i32, %arg0 : i32, i32
  }
  func.func @transform_3(%arg0: i32) -> (i32, i32, i32) {
    %c0_i32 = arith.constant 0 : i32
    %c0_i32_0 = arith.constant 0 : i32
    %c0_i32_1 = arith.constant 0 : i32
    return %arg0, %c0_i32, %c0_i32_0 : i32, i32, i32
  }
}

module attributes {stable_mosaic.version = 11 : i64} {
  func.func @_bn_act_kernel(%arg0: i32, %arg1: memref<8x512xf32, #tpu.memory_space<vmem>>, %arg2: memref<8x1xf32, #tpu.memory_space<vmem>>, %arg3: memref<8x1xf32, #tpu.memory_space<vmem>>, %arg4: memref<8x512xbf16, #tpu.memory_space<vmem>>) attributes {dimension_semantics = [#tpu.dimension_semantics<parallel>], iteration_bounds = array<i64: 2>, scalar_prefetch = 0 : i64, scratch_operands = 0 : i64, tpu.core_type = #tpu.core_type<tc>, window_params = [{transform_indices = @transform_0, window_bounds = array<i64: 8, 512>}, {pipeline_mode = #tpu.pipeline_mode<synchronous>, transform_indices = @transform_1, window_bounds = array<i64: 8, 1>}, {pipeline_mode = #tpu.pipeline_mode<synchronous>, transform_indices = @transform_2, window_bounds = array<i64: 8, 1>}, {transform_indices = @transform_3, window_bounds = array<i64: 8, 512>}]} {
    %c0 = arith.constant 0 : index
    %c0_0 = arith.constant 0 : index
    %0 = vector.load %arg1[%c0, %c0_0] : memref<8x512xf32, #tpu.memory_space<vmem>>, vector<8x512xf32>
    %c0_1 = arith.constant 0 : index
    %c0_2 = arith.constant 0 : index
    %1 = vector.load %arg2[%c0_1, %c0_2] : memref<8x1xf32, #tpu.memory_space<vmem>>, vector<8x1xf32>
    %2 = vector.broadcast %1 : vector<8x1xf32> to vector<8x512xf32>
    %3 = arith.mulf %0, %2 : vector<8x512xf32>
    %c0_3 = arith.constant 0 : index
    %c0_4 = arith.constant 0 : index
    %4 = vector.load %arg3[%c0_3, %c0_4] : memref<8x1xf32, #tpu.memory_space<vmem>>, vector<8x1xf32>
    %5 = vector.broadcast %4 : vector<8x1xf32> to vector<8x512xf32>
    %6 = arith.addf %3, %5 : vector<8x512xf32>
    %cst = arith.constant 0.000000e+00 : f32
    %7 = vector.broadcast %cst : f32 to vector<8x512xf32>
    %8 = arith.maximumf %6, %7 : vector<8x512xf32>
    %9 = arith.truncf %8 : vector<8x512xf32> to vector<8x512xbf16>
    %c0_5 = arith.constant 0 : index
    %c0_6 = arith.constant 0 : index
    %10 = vector.load %arg4[%c0_5, %c0_6] : memref<8x512xbf16, #tpu.memory_space<vmem>>, vector<8x512xbf16>
    tpu.vector_store %arg4[%c0_5, %c0_6], %9 {strides = array<i32>} : memref<8x512xbf16, #tpu.memory_space<vmem>>, vector<8x512xbf16>,
    return
  }
  func.func @transform_0(%arg0: i32) -> (i32, i32) {
    %c0_i32 = arith.constant 0 : i32
    %c0_i32_0 = arith.constant 0 : i32
    return %c0_i32, %arg0 : i32, i32
  }
  func.func @transform_1(%arg0: i32) -> (i32, i32) {
    %c0_i32 = arith.constant 0 : i32
    %c0_i32_0 = arith.constant 0 : i32
    %c0_i32_1 = arith.constant 0 : i32
    return %c0_i32, %c0_i32_0 : i32, i32
  }
  func.func @transform_2(%arg0: i32) -> (i32, i32) {
    %c0_i32 = arith.constant 0 : i32
    %c0_i32_0 = arith.constant 0 : i32
    %c0_i32_1 = arith.constant 0 : i32
    return %c0_i32, %c0_i32_0 : i32, i32
  }
  func.func @transform_3(%arg0: i32) -> (i32, i32) {
    %c0_i32 = arith.constant 0 : i32
    %c0_i32_0 = arith.constant 0 : i32
    return %c0_i32, %arg0 : i32, i32
  }
}

module attributes {stable_mosaic.version = 11 : i64} {
  func.func @_bn_act_kernel(%arg0: i32, %arg1: memref<8x512xf32, #tpu.memory_space<vmem>>, %arg2: memref<8x1xf32, #tpu.memory_space<vmem>>, %arg3: memref<8x1xf32, #tpu.memory_space<vmem>>, %arg4: memref<8x512xf32, #tpu.memory_space<vmem>>, %arg5: memref<8x512xf32, #tpu.memory_space<vmem>>) attributes {dimension_semantics = [#tpu.dimension_semantics<parallel>], iteration_bounds = array<i64: 2>, scalar_prefetch = 0 : i64, scratch_operands = 0 : i64, tpu.core_type = #tpu.core_type<tc>, window_params = [{transform_indices = @transform_0, window_bounds = array<i64: 8, 512>}, {pipeline_mode = #tpu.pipeline_mode<synchronous>, transform_indices = @transform_1, window_bounds = array<i64: 8, 1>}, {pipeline_mode = #tpu.pipeline_mode<synchronous>, transform_indices = @transform_2, window_bounds = array<i64: 8, 1>}, {transform_indices = @transform_3, window_bounds = array<i64: 8, 512>}, {transform_indices = @transform_4, window_bounds = array<i64: 8, 512>}]} {
    %c0 = arith.constant 0 : index
    %c0_0 = arith.constant 0 : index
    %0 = vector.load %arg1[%c0, %c0_0] : memref<8x512xf32, #tpu.memory_space<vmem>>, vector<8x512xf32>
    %c0_1 = arith.constant 0 : index
    %c0_2 = arith.constant 0 : index
    %1 = vector.load %arg2[%c0_1, %c0_2] : memref<8x1xf32, #tpu.memory_space<vmem>>, vector<8x1xf32>
    %2 = vector.broadcast %1 : vector<8x1xf32> to vector<8x512xf32>
    %3 = arith.mulf %0, %2 : vector<8x512xf32>
    %c0_3 = arith.constant 0 : index
    %c0_4 = arith.constant 0 : index
    %4 = vector.load %arg3[%c0_3, %c0_4] : memref<8x1xf32, #tpu.memory_space<vmem>>, vector<8x1xf32>
    %5 = vector.broadcast %4 : vector<8x1xf32> to vector<8x512xf32>
    %6 = arith.addf %3, %5 : vector<8x512xf32>
    %c0_5 = arith.constant 0 : index
    %c0_6 = arith.constant 0 : index
    %7 = vector.load %arg4[%c0_5, %c0_6] : memref<8x512xf32, #tpu.memory_space<vmem>>, vector<8x512xf32>
    %8 = arith.addf %6, %7 : vector<8x512xf32>
    %cst = arith.constant 0.000000e+00 : f32
    %9 = vector.broadcast %cst : f32 to vector<8x512xf32>
    %10 = arith.maximumf %8, %9 : vector<8x512xf32>
    %c0_7 = arith.constant 0 : index
    %c0_8 = arith.constant 0 : index
    %11 = vector.load %arg5[%c0_7, %c0_8] : memref<8x512xf32, #tpu.memory_space<vmem>>, vector<8x512xf32>
    tpu.vector_store %arg5[%c0_7, %c0_8], %10 {strides = array<i32>} : memref<8x512xf32, #tpu.memory_space<vmem>>, vector<8x512xf32>,
    return
  }
  func.func @transform_0(%arg0: i32) -> (i32, i32) {
    %c0_i32 = arith.constant 0 : i32
    %c0_i32_0 = arith.constant 0 : i32
    return %c0_i32, %arg0 : i32, i32
  }
  func.func @transform_1(%arg0: i32) -> (i32, i32) {
    %c0_i32 = arith.constant 0 : i32
    %c0_i32_0 = arith.constant 0 : i32
    %c0_i32_1 = arith.constant 0 : i32
    return %c0_i32, %c0_i32_0 : i32, i32
  }
  func.func @transform_2(%arg0: i32) -> (i32, i32) {
    %c0_i32 = arith.constant 0 : i32
    %c0_i32_0 = arith.constant 0 : i32
    %c0_i32_1 = arith.constant 0 : i32
    return %c0_i32, %c0_i32_0 : i32, i32
  }
  func.func @transform_3(%arg0: i32) -> (i32, i32) {
    %c0_i32 = arith.constant 0 : i32
    %c0_i32_0 = arith.constant 0 : i32
    return %c0_i32, %arg0 : i32, i32
  }
  func.func @transform_4(%arg0: i32) -> (i32, i32) {
    %c0_i32 = arith.constant 0 : i32
    %c0_i32_0 = arith.constant 0 : i32
    return %c0_i32, %arg0 : i32, i32
  }
}

</mosaic_0001>

<llo_original>
// kernel: basic_block_forward.5
$region0: #{basic_block_forward.5}
  #allocation0 [shape = 'u32[]', space=smem, size = 0x4, offset = 0x4, fixed_abs, tag = 'smem constant byte address 0x4 - core index']
  #allocation1 [shape = 'u32[144,128]{1,0:T(1,128)}', space=vmem, size = 0x12000, scoped, tag = 'internal scratch']
  %s0 = inlined_call_operand.hbm [shape: f32[8,1024], index: 0, kind: input, shape index: {}]
  %s1 = inlined_call_operand.hbm [shape: f32[8,1], index: 1, kind: input, shape index: {}]
  %s2 = inlined_call_operand.hbm [shape: f32[8,1], index: 2, kind: input, shape index: {}]
  %s3 = inlined_call_operand.hbm [shape: bf16[8,1024], index: 3, kind: output, shape index: {}]
  %s4 = sld [smem:[#allocation0]]
  $region57: #{basic_block_forward.5} parent=0
    _
  %s6 = ssub.s32 1, %s4
  %s7 = scalar_select 0, %s6, %s4
  $region1: #{basic_block_forward.5} parent=0
    #allocation2 [shape = 'u8[32768]{0}', space=vmem, size = 0x8000, scoped, tag = 'input window, operand 0']
    #allocation3 [shape = 's32[2]{0}', space=sflag, size = 0x8, scoped, tag = 'scoped memory for basic_block_forward.5']
    #allocation4 [shape = 's32[2]{0}', space=sflag, size = 0x8, scoped, tag = 'scoped memory for basic_block_forward.5']
    #allocation5 [shape = 'u8[4096]{0}', space=vmem, size = 0x1000, scoped, tag = 'input window, operand 1, single buffered']
    #allocation6 [shape = 's32[1]{0}', space=sflag, size = 0x4, scoped, tag = 'scoped memory for basic_block_forward.5']
    #allocation7 [shape = 'u8[4096]{0}', space=vmem, size = 0x1000, scoped, tag = 'input window, operand 2, single buffered']
    #allocation8 [shape = 'u8[16384]{0}', space=vmem, size = 0x4000, scoped, tag = 'output window, operand 0']
    %8 = vsyncpa [#allocation3], 0
    %s9 = scalar_lea.sflag [#allocation3], 1
    %10 = vsyncpa %s9, 0
    %11 = vsyncpa [#allocation6], 0
    %12 = vsyncpa [#allocation4], 0
    %s13 = scalar_lea.sflag [#allocation4], 1
    %14 = vsyncpa %s13, 0
    loop: start=0, step=1, limit=4
    $region2: #{basic_block_forward.5} parent=1 // loop_pre_header
      _
    $region3: #{basic_block_forward.5} parent=1 // loop_header
      %s16 = sphi 0, %s20
      %p17 = scmp.ge.s32.totalorder %s16, 4
      %s26 = sphi 0, %s28
      %s29 = sphi 0, %s26
      %s30 = sphi 0, %s29
      %s46 = sphi 0, %s30
      %s50 = sphi 0, %s50
      %s52 = sphi 0, %s50
      %s53 = sphi 0, %s52
      %s67 = sphi 0, %s53
      %s71 = sphi 0, %s71
      %s73 = sphi 0, %s71
      %s74 = sphi 0, %s73
      %s88 = sphi 0, %s74
      %s94 = sphi 0, %s96
      %s97 = sphi 0, %s94
      %s98 = sphi 0, %s97
      %s114 = sphi 0, %s98
    $region4: #{basic_block_forward.5} parent=1 // loop_header_branch
      %19 = sbr.rel (%p17) target = $region8
    $region5: #{basic_block_forward.5} parent=1 // loop_body
      %s21 = ssub.s32 %s16, 1
      %s22 = ssub.s32 %s16, 2
      %s23 = sadd.s32 %s16, 1
      %s24 = ssub.s32 %s16, %s23
      %p25 = scmp.eq.s32.totalorder %s24, 0
      %s27 = sadd.s32 %s26, 1
      %s28 = scalar_select %p25, %s26, %s27
      %p31 = pneg %p25
      %p32 = scmp.eq.s32.totalorder %s16, 1
      %p33 = por %p31, %p32
      %p34 = scmp.ne.s32.totalorder %s26, %s29
      %p35 = scmp.eq.s32.totalorder %s16, 0
      %p36 = por %p34, %p35
      %p37 = scmp.ne.s32.totalorder %s26, %s29
      %p38 = scmp.eq.s32.totalorder %s21, 1
      %p39 = por %p37, %p38
      %p40 = scmp.ne.s32.totalorder %s29, %s30
      %p41 = scmp.eq.s32.totalorder %s21, 0
      %p42 = por %p40, %p41
      %p43 = scmp.ne.s32.totalorder %s29, %s30
      %p44 = scmp.eq.s32.totalorder %s22, 1
      %p45 = por %p43, %p44
      %p47 = scmp.ne.s32.totalorder %s30, %s46
      %p48 = scmp.eq.s32.totalorder %s22, 0
      %p49 = por %p47, %p48
      %s51 = sadd.s32 %s50, 1
      %p54 = scmp.eq.s32.totalorder %s16, 1
      %p55 = scmp.ne.s32.totalorder %s50, %s52
      %p56 = scmp.eq.s32.totalorder %s16, 0
      %p57 = por %p55, %p56
      %p58 = scmp.ne.s32.totalorder %s50, %s52
      %p59 = scmp.eq.s32.totalorder %s21, 1
      %p60 = por %p58, %p59
      %p61 = scmp.ne.s32.totalorder %s52, %s53
      %p62 = scmp.eq.s32.totalorder %s21, 0
      %p63 = por %p61, %p62
      %p64 = scmp.ne.s32.totalorder %s52, %s53
      %p65 = scmp.eq.s32.totalorder %s22, 1
      %p66 = por %p64, %p65
      %p68 = scmp.ne.s32.totalorder %s53, %s67
      %p69 = scmp.eq.s32.totalorder %s22, 0
      %p70 = por %p68, %p69
      %s72 = sadd.s32 %s71, 1
      %p75 = scmp.eq.s32.totalorder %s16, 1
      %p76 = scmp.ne.s32.totalorder %s71, %s73
      %p77 = scmp.eq.s32.totalorder %s16, 0
      %p78 = por %p76, %p77
      %p79 = scmp.ne.s32.totalorder %s71, %s73
      %p80 = scmp.eq.s32.totalorder %s21, 1
      %p81 = por %p79, %p80
      %p82 = scmp.ne.s32.totalorder %s73, %s74
      %p83 = scmp.eq.s32.totalorder %s21, 0
      %p84 = por %p82, %p83
      %p85 = scmp.ne.s32.totalorder %s73, %s74
      %p86 = scmp.eq.s32.totalorder %s22, 1
      %p87 = por %p85, %p86
      %p89 = scmp.ne.s32.totalorder %s74, %s88
      %p90 = scmp.eq.s32.totalorder %s22, 0
      %p91 = por %p89, %p90
      %s92 = ssub.s32 %s16, %s23
      %p93 = scmp.eq.s32.totalorder %s92, 0
      %s95 = sadd.s32 %s94, 1
      %s96 = scalar_select %p93, %s94, %s95
      %p99 = pneg %p93
      %p100 = scmp.eq.s32.totalorder %s16, 1
      %p101 = por %p99, %p100
      %p102 = scmp.ne.s32.totalorder %s94, %s97
      %p103 = scmp.eq.s32.totalorder %s16, 0
      %p104 = por %p102, %p103
      %p105 = scmp.ne.s32.totalorder %s94, %s97
      %p106 = scmp.eq.s32.totalorder %s21, 1
      %p107 = por %p105, %p106
      %p108 = scmp.ne.s32.totalorder %s97, %s98
      %p109 = scmp.eq.s32.totalorder %s21, 0
      %p110 = por %p108, %p109
      %p111 = scmp.ne.s32.totalorder %s97, %s98
      %p112 = scmp.eq.s32.totalorder %s22, 1
      %p113 = por %p111, %p112
      %p115 = scmp.ne.s32.totalorder %s98, %s114
      %p116 = scmp.eq.s32.totalorder %s22, 0
      %p117 = por %p115, %p116
      %p118 = scmp.le.s32.totalorder 1, %s16
      %p119 = scmp.lt.s32.totalorder %s16, 3
      %p120 = pnand %p118, %p119
      %p121 = pneg %p120
      // Predicated region
      $region9: #{basic_block_forward.5} parent=5 // pred_check
        _
      $region10: #{basic_block_forward.5} parent=5 // pred_check_branch
        %123 = sbr.rel (%p120) target = $region12
      $region11: #{basic_block_forward.5} parent=5 // pred_region
        %s124 = ssub.s32 %s16, 1
        // Predicated region
        $region13: #{basic_block_forward.5} parent=11 // pred_check
          %p125 = pneg %p63
        $region14: #{basic_block_forward.5} parent=11 // pred_check_branch
          %127 = sbr.rel (%p125) target = $region16
        $region15: #{basic_block_forward.5} parent=11 // pred_region
          %s129 = ssub.s32 128, 128
          %130 = vsyncadd [#allocation6], %s129
          %s132 = sshll.u32 [#allocation5], 4
          %s133 = int_to_ptr.vmem [resolvable:$true] %s132
          %135 = dma.hbm_to_vmem [thread:$0]  %s1, 128, %s133, [#allocation6]
        $region16: #{basic_block_forward.5} parent=11 // pred_fallthru
          _
        // Predicated region
        $region17: #{basic_block_forward.5} parent=11 // pred_check
          %p136 = pneg %p84
        $region18: #{basic_block_forward.5} parent=11 // pred_check_branch
          %138 = sbr.rel (%p136) target = $region20
        $region19: #{basic_block_forward.5} parent=11 // pred_region
          %s140 = ssub.s32 128, 128
          %141 = vsyncadd [#allocation6], %s140
          %s143 = sshll.u32 [#allocation7], 4
          %s144 = int_to_ptr.vmem [resolvable:$true] %s143
          %146 = dma.hbm_to_vmem [thread:$0]  %s2, 128, %s144, [#allocation6]
        $region20: #{basic_block_forward.5} parent=11 // pred_fallthru
          _
      $region12: #{basic_block_forward.5} parent=5 // pred_fallthru
        _
      %p147 = scmp.lt.s32.totalorder %s16, 2
      // Predicated region
      $region21: #{basic_block_forward.5} parent=5 // pred_check
        %p148 = pneg %p147
      $region22: #{basic_block_forward.5} parent=5 // pred_check_branch
        %150 = sbr.rel (%p148) target = $region24
      $region23: #{basic_block_forward.5} parent=5 // pred_region
        // Predicated region
        $region25: #{basic_block_forward.5} parent=23 // pred_check
          %p151 = pneg %p36
        $region26: #{basic_block_forward.5} parent=23 // pred_check_branch
          %153 = sbr.rel (%p151) target = $region28
        $region27: #{basic_block_forward.5} parent=23 // pred_region
          %s154 = sand.u32 %s26, 1
          %s155 = scalar_lea.sflag [#allocation3], %s154
          %s156 = sand.u32 %s26, 1
          %s157 = smul.addr %s156, 32
          %s158 = scalar_lea.vmem [#allocation2], %s157
          %s159 = smul.u32 4, %s16
          %s161 = ssub.s32 512, 512
          %162 = vsyncadd %s155, %s161
          %s163 = smul.addr %s159, 128
          %s164 = scalar_lea.hbm %s0, %s163
          %s166 = sshll.u32 %s158, 4
          %s167 = int_to_ptr.vmem [resolvable:$true] %s166
          %169 = dma.hbm_to_vmem [thread:$0]  %s164, 512, %s167, %s155
        $region28: #{basic_block_forward.5} parent=23 // pred_fallthru
          _
      $region24: #{basic_block_forward.5} parent=5 // pred_fallthru
        _
      %p170 = scmp.le.s32.totalorder 1, %s16
      %p171 = scmp.lt.s32.totalorder %s16, 3
      %p172 = pnand %p170, %p171
      %p173 = pneg %p172
      // Predicated region
      $region29: #{basic_block_forward.5} parent=5 // pred_check
        _
      $region30: #{basic_block_forward.5} parent=5 // pred_check_branch
        %175 = sbr.rel (%p172) target = $region32
      $region31: #{basic_block_forward.5} parent=5 // pred_region
        %s176 = ssub.s32 %s16, 1
        %s177 = sand.u32 %s29, 1
        %s178 = scalar_lea.sflag [#allocation3], %s177
        %s179 = sand.u32 %s29, 1
        %s180 = smul.addr %s179, 32
        %s181 = scalar_lea.vmem [#allocation2], %s180
        // Predicated region
        $region33: #{basic_block_forward.5} parent=31 // pred_check
          %p182 = pneg %p42
        $region34: #{basic_block_forward.5} parent=31 // pred_check_branch
          %184 = sbr.rel (%p182) target = $region36
        $region35: #{basic_block_forward.5} parent=31 // pred_region
          %185 = dma.done %s178, 512
        $region36: #{basic_block_forward.5} parent=31 // pred_fallthru
          _
        // Predicated region
        $region37: #{basic_block_forward.5} parent=31 // pred_check
          %p186 = pneg %p63
        $region38: #{basic_block_forward.5} parent=31 // pred_check_branch
          %188 = sbr.rel (%p186) target = $region40
        $region39: #{basic_block_forward.5} parent=31 // pred_region
          %189 = dma.done [#allocation6], 128
        $region40: #{basic_block_forward.5} parent=31 // pred_fallthru
          _
        // Predicated region
        $region41: #{basic_block_forward.5} parent=31 // pred_check
          %p190 = pneg %p84
        $region42: #{basic_block_forward.5} parent=31 // pred_check_branch
          %192 = sbr.rel (%p190) target = $region44
        $region43: #{basic_block_forward.5} parent=31 // pred_region
          %193 = dma.done [#allocation6], 128
        $region44: #{basic_block_forward.5} parent=31 // pred_fallthru
          _
        %s194 = sand.u32 %s29, 1
        %s195 = scalar_lea.sflag [#allocation3], %s194
        %s196 = sand.u32 %s29, 1
        %s197 = smul.addr %s196, 32
        %s198 = scalar_lea.vmem [#allocation2], %s197
        %p199 = pneg %p42
        %p200 = pneg %p39
        %p201 = pneg %p63
        %p202 = pneg %p60
        %p203 = pneg %p84
        %p204 = pneg %p81
        %p205 = pneg %p110
        %p206 = pneg %p107
        %s207 = sand.u32 %s97, 1
        %s208 = scalar_lea.sflag [#allocation4], %s207
        %s209 = sand.u32 %s97, 1
        %s210 = smul.addr %s209, 16
        %s211 = scalar_lea.vmem [#allocation8], %s210
        %s212 = smul.u32 4, %s21
        %s213 = smul.u32 4, %s21
        %v214 = vld [vmem:[%s181] sm:$0xff]
        %v215 = vld [vmem:[%s181 + $0x8] sm:$0xff]
        %v216 = vld [vmem:[%s181 + $0x10] sm:$0xff]
        %v217 = vld [vmem:[%s181 + $0x18] sm:$0xff]
        %v218 = vld [vmem:[#allocation5] sm:$0xff]
        %220 = vset.pattern.permute.xlu0 0
        %221 = vperm.xlu0 %220, %v218
        %v222 = vpop.permute.xlu0 %221
        %v224 = vmul.f32 %v214, %v222
        %v225 = vmul.f32 %v215, %v222
        %v226 = vmul.f32 %v216, %v222
        %v227 = vmul.f32 %v217, %v222
        %v228 = vld [vmem:[#allocation7] sm:$0xff]
        %230 = vset.pattern.permute.xlu0 0
        %231 = vperm.xlu0 %230, %v228
        %v232 = vpop.permute.xlu0 %231
        %v234 = vadd.f32 %v224, %v232
        %v235 = vadd.f32 %v225, %v232
        %v236 = vadd.f32 %v226, %v232
        %v237 = vadd.f32 %v227, %v232
        %v238 = vmax.f32 %v234, 0.0
        %v239 = vmax.f32 %v235, 0.0
        %v240 = vmax.f32 %v236, 0.0
        %v241 = vmax.f32 %v237, 0.0
        %v242 = vpack.c.bf16 %v238, %v238
        %v243 = vpack.c.bf16 %v239, %v239
        %v244 = vpack.c.bf16 %v240, %v240
        %v245 = vpack.c.bf16 %v241, %v241
        %v250 = vunpack.c.l.b16 %v242
        %v251 = vunpack.c.l.b16 %v243
        %v252 = vunpack.c.l.b16 %v244
        %v253 = vunpack.c.l.b16 %v245
        %v254 = vpack.c.b16 %v251, %v250
        %v255 = vpack.c.b16 %v253, %v252
        %258 = vst [vmem:[%s211] sm:$0xff] %v254
        %259 = vst [vmem:[%s211 + $0x8] sm:$0xff] %v255
        %s260 = sand.u32 %s97, 1
        %s261 = scalar_lea.sflag [#allocation4], %s260
        %s262 = sand.u32 %s97, 1
        %s263 = smul.addr %s262, 16
        %s264 = scalar_lea.vmem [#allocation8], %s263
        // Predicated region
        $region45: #{basic_block_forward.5} parent=31 // pred_check
          %p265 = pneg %p107
        $region46: #{basic_block_forward.5} parent=31 // pred_check_branch
          %267 = sbr.rel (%p265) target = $region48
        $region47: #{basic_block_forward.5} parent=31 // pred_region
          %s268 = smul.u32 4, %s21
          %s270 = ssub.s32 256, 256
          %271 = vsyncadd %s261, %s270
          %s272 = smul.addr %s268, 64
          %s273 = scalar_lea.hbm %s3, %s272
          %s275 = sshll.u32 %s264, 4
          %s276 = int_to_ptr.vmem [resolvable:$true] %s275
          %278 = dma.vmem_to_hbm [thread:$0]  %s276, 256, %s273, %s261
        $region48: #{basic_block_forward.5} parent=31 // pred_fallthru
          _
      $region32: #{basic_block_forward.5} parent=5 // pred_fallthru
        _
      %p279 = scmp.le.s32.totalorder 2, %s16
      // Predicated region
      $region49: #{basic_block_forward.5} parent=5 // pred_check
        %p280 = pneg %p279
      $region50: #{basic_block_forward.5} parent=5 // pred_check_branch
        %282 = sbr.rel (%p280) target = $region52
      $region51: #{basic_block_forward.5} parent=5 // pred_region
        %s283 = ssub.s32 %s16, 2
        // Predicated region
        $region53: #{basic_block_forward.5} parent=51 // pred_check
          %p284 = pneg %p113
        $region54: #{basic_block_forward.5} parent=51 // pred_check_branch
          %286 = sbr.rel (%p284) target = $region56
        $region55: #{basic_block_forward.5} parent=51 // pred_region
          %s287 = sand.u32 %s98, 1
          %s288 = scalar_lea.sflag [#allocation4], %s287
          %s289 = sand.u32 %s98, 1
          %s290 = smul.addr %s289, 16
          %s291 = scalar_lea.vmem [#allocation8], %s290
          %292 = dma.done %s288, 256
        $region56: #{basic_block_forward.5} parent=51 // pred_fallthru
          _
      $region52: #{basic_block_forward.5} parent=5 // pred_fallthru
        _
    $region6: #{basic_block_forward.5} parent=1 // loop_footer
      %s20 = sadd.s32 1, %s16
    $region7: #{basic_block_forward.5} parent=1 // loop_footer_branch
      %15 = sbr.rel target = $region3
    $region8: #{basic_block_forward.5} parent=1 // loop_exit
      _
    %293 = vsyncpa [#allocation3], 1
    %s294 = scalar_lea.sflag [#allocation3], 1
    %295 = vsyncpa %s294, 1
    %296 = vsyncpa [#allocation6], 1
    %297 = vsyncpa [#allocation4], 1
    %s298 = scalar_lea.sflag [#allocation4], 1
    %299 = vsyncpa %s298, 1

// kernel: basic_block_forward.4
$region0: #{basic_block_forward.4}
  #allocation0 [shape = 'u32[]', space=smem, size = 0x4, offset = 0x4, fixed_abs, tag = 'smem constant byte address 0x4 - core index']
  #allocation1 [shape = 'u32[144,128]{1,0:T(1,128)}', space=vmem, size = 0x12000, scoped, tag = 'internal scratch']
  %s0 = inlined_call_operand.hbm [shape: bf16[108,1024], index: 0, kind: input, shape index: {}]
  %s1 = inlined_call_operand.hbm [shape: bf16[8,108], index: 1, kind: input, shape index: {}]
  %s2 = inlined_call_operand.hbm [shape: f32[8,1024], index: 2, kind: output, shape index: {0}]
  %s3 = inlined_call_operand.hbm [shape: f32[2,8,2], index: 3, kind: output, shape index: {1}]
  %4 = xla_tuple %s2, %s3
  %s5 = sld [smem:[#allocation0]]
  $region57: #{basic_block_forward.4} parent=0
    _
  %s7 = ssub.s32 1, %s5
  %s8 = scalar_select 0, %s7, %s5
  $region1: #{basic_block_forward.4} parent=0
    #allocation2 [shape = 'u8[229376]{0}', space=vmem, size = 0x38000, scoped, tag = 'input window, operand 0']
    #allocation3 [shape = 's32[2]{0}', space=sflag, size = 0x8, scoped, tag = 'scoped memory for basic_block_forward.4']
    #allocation4 [shape = 's32[2]{0}', space=sflag, size = 0x8, scoped, tag = 'scoped memory for basic_block_forward.4']
    #allocation5 [shape = 'u8[2048]{0}', space=vmem, size = 0x800, scoped, tag = 'input window, operand 1, single buffered']
    #allocation6 [shape = 's32[1]{0}', space=sflag, size = 0x4, scoped, tag = 'scoped memory for basic_block_forward.4']
    #allocation7 [shape = 'u8[32768]{0}', space=vmem, size = 0x8000, scoped, tag = 'output window, operand 0']
    #allocation8 [shape = 'u8[8192]{0}', space=vmem, size = 0x2000, scoped, tag = 'output window, operand 1']
    #allocation9 [shape = 's32[2]{0}', space=sflag, size = 0x8, scoped, tag = 'scoped memory for basic_block_forward.4']
    %9 = vsyncpa [#allocation3], 0
    %s10 = scalar_lea.sflag [#allocation3], 1
    %11 = vsyncpa %s10, 0
    %12 = vsyncpa [#allocation6], 0
    %13 = vsyncpa [#allocation4], 0
    %s14 = scalar_lea.sflag [#allocation4], 1
    %15 = vsyncpa %s14, 0
    %16 = vsyncpa [#allocation9], 0
    %s17 = scalar_lea.sflag [#allocation9], 1
    %18 = vsyncpa %s17, 0
    loop: start=0, step=1, limit=4
    $region2: #{basic_block_forward.4} parent=1 // loop_pre_header
      _
    $region3: #{basic_block_forward.4} parent=1 // loop_header
      %s20 = sphi 0, %s24
      %p21 = scmp.ge.s32.totalorder %s20, 4
      %s30 = sphi 0, %s32
      %s33 = sphi 0, %s30
      %s34 = sphi 0, %s33
      %s50 = sphi 0, %s34
      %s54 = sphi 0, %s54
      %s56 = sphi 0, %s54
      %s57 = sphi 0, %s56
      %s71 = sphi 0, %s57
      %s77 = sphi 0, %s79
      %s80 = sphi 0, %s77
      %s81 = sphi 0, %s80
      %s97 = sphi 0, %s81
      %s103 = sphi 0, %s105
      %s106 = sphi 0, %s103
      %s107 = sphi 0, %s106
      %s123 = sphi 0, %s107
    $region4: #{basic_block_forward.4} parent=1 // loop_header_branch
      %23 = sbr.rel (%p21) target = $region8
    $region5: #{basic_block_forward.4} parent=1 // loop_body
      %s25 = ssub.s32 %s20, 1
      %s26 = ssub.s32 %s20, 2
      %s27 = sadd.s32 %s20, 1
      %s28 = ssub.s32 %s20, %s27
      %p29 = scmp.eq.s32.totalorder %s28, 0
      %s31 = sadd.s32 %s30, 1
      %s32 = scalar_select %p29, %s30, %s31
      %p35 = pneg %p29
      %p36 = scmp.eq.s32.totalorder %s20, 1
      %p37 = por %p35, %p36
      %p38 = scmp.ne.s32.totalorder %s30, %s33
      %p39 = scmp.eq.s32.totalorder %s20, 0
      %p40 = por %p38, %p39
      %p41 = scmp.ne.s32.totalorder %s30, %s33
      %p42 = scmp.eq.s32.totalorder %s25, 1
      %p43 = por %p41, %p42
      %p44 = scmp.ne.s32.totalorder %s33, %s34
      %p45 = scmp.eq.s32.totalorder %s25, 0
      %p46 = por %p44, %p45
      %p47 = scmp.ne.s32.totalorder %s33, %s34
      %p48 = scmp.eq.s32.totalorder %s26, 1
      %p49 = por %p47, %p48
      %p51 = scmp.ne.s32.totalorder %s34, %s50
      %p52 = scmp.eq.s32.totalorder %s26, 0
      %p53 = por %p51, %p52
      %s55 = sadd.s32 %s54, 1
      %p58 = scmp.eq.s32.totalorder %s20, 1
      %p59 = scmp.ne.s32.totalorder %s54, %s56
      %p60 = scmp.eq.s32.totalorder %s20, 0
      %p61 = por %p59, %p60
      %p62 = scmp.ne.s32.totalorder %s54, %s56
      %p63 = scmp.eq.s32.totalorder %s25, 1
      %p64 = por %p62, %p63
      %p65 = scmp.ne.s32.totalorder %s56, %s57
      %p66 = scmp.eq.s32.totalorder %s25, 0
      %p67 = por %p65, %p66
      %p68 = scmp.ne.s32.totalorder %s56, %s57
      %p69 = scmp.eq.s32.totalorder %s26, 1
      %p70 = por %p68, %p69
      %p72 = scmp.ne.s32.totalorder %s57, %s71
      %p73 = scmp.eq.s32.totalorder %s26, 0
      %p74 = por %p72, %p73
      %s75 = ssub.s32 %s20, %s27
      %p76 = scmp.eq.s32.totalorder %s75, 0
      %s78 = sadd.s32 %s77, 1
      %s79 = scalar_select %p76, %s77, %s78
      %p82 = pneg %p76
      %p83 = scmp.eq.s32.totalorder %s20, 1
      %p84 = por %p82, %p83
      %p85 = scmp.ne.s32.totalorder %s77, %s80
      %p86 = scmp.eq.s32.totalorder %s20, 0
      %p87 = por %p85, %p86
      %p88 = scmp.ne.s32.totalorder %s77, %s80
      %p89 = scmp.eq.s32.totalorder %s25, 1
      %p90 = por %p88, %p89
      %p91 = scmp.ne.s32.totalorder %s80, %s81
      %p92 = scmp.eq.s32.totalorder %s25, 0
      %p93 = por %p91, %p92
      %p94 = scmp.ne.s32.totalorder %s80, %s81
      %p95 = scmp.eq.s32.totalorder %s26, 1
      %p96 = por %p94, %p95
      %p98 = scmp.ne.s32.totalorder %s81, %s97
      %p99 = scmp.eq.s32.totalorder %s26, 0
      %p100 = por %p98, %p99
      %s101 = ssub.s32 %s20, %s27
      %p102 = scmp.eq.s32.totalorder %s101, 0
      %s104 = sadd.s32 %s103, 1
      %s105 = scalar_select %p102, %s103, %s104
      %p108 = pneg %p102
      %p109 = scmp.eq.s32.totalorder %s20, 1
      %p110 = por %p108, %p109
      %p111 = scmp.ne.s32.totalorder %s103, %s106
      %p112 = scmp.eq.s32.totalorder %s20, 0
      %p113 = por %p111, %p112
      %p114 = scmp.ne.s32.totalorder %s103, %s106
      %p115 = scmp.eq.s32.totalorder %s25, 1
      %p116 = por %p114, %p115
      %p117 = scmp.ne.s32.totalorder %s106, %s107
      %p118 = scmp.eq.s32.totalorder %s25, 0
      %p119 = por %p117, %p118
      %p120 = scmp.ne.s32.totalorder %s106, %s107
      %p121 = scmp.eq.s32.totalorder %s26, 1
      %p122 = por %p120, %p121
      %p124 = scmp.ne.s32.totalorder %s107, %s123
      %p125 = scmp.eq.s32.totalorder %s26, 0
      %p126 = por %p124, %p125
      %p127 = scmp.le.s32.totalorder 1, %s20
      %p128 = scmp.lt.s32.totalorder %s20, 3
      %p129 = pnand %p127, %p128
      %p130 = pneg %p129
      // Predicated region
      $region9: #{basic_block_forward.4} parent=5 // pred_check
        _
      $region10: #{basic_block_forward.4} parent=5 // pred_check_branch
        %132 = sbr.rel (%p129) target = $region12
      $region11: #{basic_block_forward.4} parent=5 // pred_region
        %s133 = ssub.s32 %s20, 1
        // Predicated region
        $region13: #{basic_block_forward.4} parent=11 // pred_check
          %p134 = pneg %p67
        $region14: #{basic_block_forward.4} parent=11 // pred_check_branch
          %136 = sbr.rel (%p134) target = $region16
        $region15: #{basic_block_forward.4} parent=11 // pred_region
          %s138 = ssub.s32 64, 64
          %139 = vsyncadd [#allocation6], %s138
          %s141 = sshll.u32 [#allocation5], 4
          %s142 = int_to_ptr.vmem [resolvable:$true] %s141
          %144 = dma.hbm_to_vmem [thread:$0]  %s1, 64, %s142, [#allocation6]
        $region16: #{basic_block_forward.4} parent=11 // pred_fallthru
          _
      $region12: #{basic_block_forward.4} parent=5 // pred_fallthru
        _
      %p145 = scmp.lt.s32.totalorder %s20, 2
      // Predicated region
      $region17: #{basic_block_forward.4} parent=5 // pred_check
        %p146 = pneg %p145
      $region18: #{basic_block_forward.4} parent=5 // pred_check_branch
        %148 = sbr.rel (%p146) target = $region20
      $region19: #{basic_block_forward.4} parent=5 // pred_region
        // Predicated region
        $region21: #{basic_block_forward.4} parent=19 // pred_check
          %p149 = pneg %p40
        $region22: #{basic_block_forward.4} parent=19 // pred_check_branch
          %151 = sbr.rel (%p149) target = $region24
        $region23: #{basic_block_forward.4} parent=19 // pred_region
          %s152 = sand.u32 %s30, 1
          %s153 = scalar_lea.sflag [#allocation3], %s152
          %s154 = sand.u32 %s30, 1
          %s155 = smul.addr %s154, 224
          %s156 = scalar_lea.vmem [#allocation2], %s155
          %s157 = smul.u32 4, %s20
          %s159 = ssub.s32 3584, 3584
          %160 = vsyncadd %s153, %s159
          %s161 = smul.addr %s157, 64
          %s162 = scalar_lea.hbm %s0, %s161
          %s163 = sshll.u32 %s156, 4
          %s164 = int_to_ptr.vmem [resolvable:$true] %s163
          %169 = dma.hbm_to_vmem [thread:$0]  %s162, 3584, %s164, %s153, 512, 256, 16
        $region24: #{basic_block_forward.4} parent=19 // pred_fallthru
          _
      $region20: #{basic_block_forward.4} parent=5 // pred_fallthru
        _
      %p170 = scmp.le.s32.totalorder 1, %s20
      %p171 = scmp.lt.s32.totalorder %s20, 3
      %p172 = pnand %p170, %p171
      %p173 = pneg %p172
      // Predicated region
      $region25: #{basic_block_forward.4} parent=5 // pred_check
        _
      $region26: #{basic_block_forward.4} parent=5 // pred_check_branch
        %175 = sbr.rel (%p172) target = $region28
      $region27: #{basic_block_forward.4} parent=5 // pred_region
        %s176 = ssub.s32 %s20, 1
        %s177 = sand.u32 %s33, 1
        %s178 = scalar_lea.sflag [#allocation3], %s177
        %s179 = sand.u32 %s33, 1
        %s180 = smul.addr %s179, 224
        %s181 = scalar_lea.vmem [#allocation2], %s180
        // Predicated region
        $region29: #{basic_block_forward.4} parent=27 // pred_check
          %p182 = pneg %p46
        $region30: #{basic_block_forward.4} parent=27 // pred_check_branch
          %184 = sbr.rel (%p182) target = $region32
        $region31: #{basic_block_forward.4} parent=27 // pred_region
          %185 = dma.done %s178, 3584
        $region32: #{basic_block_forward.4} parent=27 // pred_fallthru
          _
        // Predicated region
        $region33: #{basic_block_forward.4} parent=27 // pred_check
          %p186 = pneg %p67
        $region34: #{basic_block_forward.4} parent=27 // pred_check_branch
          %188 = sbr.rel (%p186) target = $region36
        $region35: #{basic_block_forward.4} parent=27 // pred_region
          %189 = dma.done [#allocation6], 64
        $region36: #{basic_block_forward.4} parent=27 // pred_fallthru
          _
        %s190 = sand.u32 %s33, 1
        %s191 = scalar_lea.sflag [#allocation3], %s190
        %s192 = sand.u32 %s33, 1
        %s193 = smul.addr %s192, 224
        %s194 = scalar_lea.vmem [#allocation2], %s193
        %p195 = pneg %p46
        %p196 = pneg %p43
        %p197 = pneg %p67
        %p198 = pneg %p64
        %p199 = pneg %p93
        %p200 = pneg %p90
        %s201 = sand.u32 %s80, 1
        %s202 = scalar_lea.sflag [#allocation4], %s201
        %s203 = sand.u32 %s80, 1
        %s204 = smul.addr %s203, 32
        %s205 = scalar_lea.vmem [#allocation7], %s204
        %p206 = pneg %p119
        %p207 = pneg %p116
        %s208 = sand.u32 %s106, 1
        %s209 = scalar_lea.sflag [#allocation9], %s208
        %s210 = sand.u32 %s106, 1
        %s211 = smul.addr %s210, 8
        %s212 = scalar_lea.vmem [#allocation8], %s211
        %s213 = smul.u32 4, %s25
        %s214 = smul.u32 4, %s25
        %v216 = vld [vmem:[#allocation5] sm:$0xf]
        %v217 = vld [vmem:[%s181] sm:$0xff]
        %v218 = vld [vmem:[%s181 + $0x8] sm:$0xff]
        %v219 = vld [vmem:[%s181 + $0x10] sm:$0xff]
        %v220 = vld [vmem:[%s181 + $0x18] sm:$0xff]
        %v221 = vld [vmem:[%s181 + $0x20] sm:$0xff]
        %v222 = vld [vmem:[%s181 + $0x28] sm:$0xff]
        %v223 = vld [vmem:[%s181 + $0x30] sm:$0xff]
        %v224 = vld [vmem:[%s181 + $0x38] sm:$0xff]
        %v225 = vld [vmem:[%s181 + $0x40] sm:$0xff]
        %v226 = vld [vmem:[%s181 + $0x48] sm:$0xff]
        %v227 = vld [vmem:[%s181 + $0x50] sm:$0xff]
        %v228 = vld [vmem:[%s181 + $0x58] sm:$0xff]
        %v229 = vld [vmem:[%s181 + $0x60] sm:$0xff]
        %v230 = vld [vmem:[%s181 + $0x68] sm:$0xff]
        %v231 = vld [vmem:[%s181 + $0x70] sm:$0xff]
        %v232 = vld [vmem:[%s181 + $0x78] sm:$0xff]
        %v233 = vld [vmem:[%s181 + $0x80] sm:$0xff]
        %v234 = vld [vmem:[%s181 + $0x88] sm:$0xff]
        %v235 = vld [vmem:[%s181 + $0x90] sm:$0xff]
        %v236 = vld [vmem:[%s181 + $0x98] sm:$0xff]
        %v237 = vld [vmem:[%s181 + $0xa0] sm:$0xff]
        %v238 = vld [vmem:[%s181 + $0xa8] sm:$0xff]
        %v239 = vld [vmem:[%s181 + $0xb0] sm:$0xff]
        %v240 = vld [vmem:[%s181 + $0xb8] sm:$0xff]
        %v241 = vld [vmem:[%s181 + $0xc0] sm:$0xff]
        %v242 = vld [vmem:[%s181 + $0xc8] sm:$0xff]
        %v243 = vld [vmem:[%s181 + $0xd0] sm:$0x33]
        %v244 = vld [vmem:[%s181 + $0xd8] sm:$0x33]
        %v273 = vunpack.c.l.b16 %v217
        %v274 = vunpack.c.h.b16 %v217
        %v275 = vunpack.c.l.b16 %v218
        %v276 = vunpack.c.h.b16 %v218
        %v277 = vunpack.c.l.b16 %v219
        %v278 = vunpack.c.h.b16 %v219
        %v279 = vunpack.c.l.b16 %v220
        %v280 = vunpack.c.h.b16 %v220
        %v281 = vunpack.c.l.b16 %v221
        %v282 = vunpack.c.h.b16 %v221
        %v283 = vunpack.c.l.b16 %v222
        %v284 = vunpack.c.h.b16 %v222
        %v285 = vunpack.c.l.b16 %v223
        %v286 = vunpack.c.h.b16 %v223
        %v287 = vunpack.c.l.b16 %v224
        %v288 = vunpack.c.h.b16 %v224
        %v289 = vunpack.c.l.b16 %v225
        %v290 = vunpack.c.h.b16 %v225
        %v291 = vunpack.c.l.b16 %v226
        %v292 = vunpack.c.h.b16 %v226
        %v293 = vunpack.c.l.b16 %v227
        %v294 = vunpack.c.h.b16 %v227
        %v295 = vunpack.c.l.b16 %v228
        %v296 = vunpack.c.h.b16 %v228
        %v297 = vunpack.c.l.b16 %v229
        %v298 = vunpack.c.h.b16 %v229
        %v299 = vunpack.c.l.b16 %v230
        %v300 = vunpack.c.h.b16 %v230
        %v301 = vunpack.c.l.b16 %v231
        %v302 = vunpack.c.h.b16 %v231
        %v303 = vunpack.c.l.b16 %v232
        %v304 = vunpack.c.h.b16 %v232
        %v305 = vunpack.c.l.b16 %v233
        %v306 = vunpack.c.h.b16 %v233
        %v307 = vunpack.c.l.b16 %v234
        %v308 = vunpack.c.h.b16 %v234
        %v309 = vunpack.c.l.b16 %v235
        %v310 = vunpack.c.h.b16 %v235
        %v311 = vunpack.c.l.b16 %v236
        %v312 = vunpack.c.h.b16 %v236
        %v313 = vunpack.c.l.b16 %v237
        %v314 = vunpack.c.h.b16 %v237
        %v315 = vunpack.c.l.b16 %v238
        %v316 = vunpack.c.h.b16 %v238
        %v317 = vunpack.c.l.b16 %v239
        %v318 = vunpack.c.h.b16 %v239
        %v319 = vunpack.c.l.b16 %v240
        %v320 = vunpack.c.h.b16 %v240
        %v321 = vunpack.c.l.b16 %v241
        %v322 = vunpack.c.h.b16 %v241
        %v323 = vunpack.c.l.b16 %v242
        %v324 = vunpack.c.h.b16 %v242
        %v325 = vunpack.c.l.b16 %v243
        %v326 = vunpack.c.h.b16 %v243
        %v327 = vunpack.c.l.b16 %v244
        %v328 = vunpack.c.h.b16 %v244
        %v329 = vpack.c.b16 %v277, %v273
        %v330 = vpack.c.b16 %v278, %v274
        %v331 = vpack.c.b16 %v279, %v275
        %v332 = vpack.c.b16 %v280, %v276
        %v333 = vpack.c.b16 %v285, %v281
        %v334 = vpack.c.b16 %v286, %v282
        %v335 = vpack.c.b16 %v287, %v283
        %v336 = vpack.c.b16 %v288, %v284
        %v337 = vpack.c.b16 %v293, %v289
        %v338 = vpack.c.b16 %v294, %v290
        %v339 = vpack.c.b16 %v295, %v291
        %v340 = vpack.c.b16 %v296, %v292
        %v341 = vpack.c.b16 %v301, %v297
        %v342 = vpack.c.b16 %v302, %v298
        %v343 = vpack.c.b16 %v303, %v299
        %v344 = vpack.c.b16 %v304, %v300
        %v345 = vpack.c.b16 %v309, %v305
        %v346 = vpack.c.b16 %v310, %v306
        %v347 = vpack.c.b16 %v311, %v307
        %v348 = vpack.c.b16 %v312, %v308
        %v349 = vpack.c.b16 %v317, %v313
        %v350 = vpack.c.b16 %v318, %v314
        %v351 = vpack.c.b16 %v319, %v315
        %v352 = vpack.c.b16 %v320, %v316
        %v353 = vpack.c.b16 %v325, %v321
        %v354 = vpack.c.b16 %v326, %v322
        %v355 = vpack.c.b16 %v327, %v323
        %v356 = vpack.c.b16 %v328, %v324
        %vm381 = vcmask 883712
        %v383 = vsel %vm381, %v216, 0
        %vm385 = vcmask 1045504
        %v387 = vsel %vm385, %v353, 0
        %v390 = vsel %vm385, %v354, 0
        %v393 = vsel %vm385, %v355, 0
        %v396 = vsel %vm385, %v356, 0
        %398 = vmatprep.subr.bf16.mxu0 %v330
        %399 = vmatpush1.bf16.msra.mxu0 %v329
        %400 = vmatprep.subr.bf16.mxu0 %v334
        %401 = vmatpush1.bf16.msra.mxu0 %v333
        %402 = vmatprep.subr.bf16.mxu0 %v338
        %403 = vmatpush1.bf16.msra.mxu0 %v337
        %404 = vmatprep.subr.bf16.mxu0 %v342
        %405 = vmatpush1.bf16.msra.mxu0 %v341
        %406 = vmatprep.subr.bf16.mxu0 %v346
        %407 = vmatpush1.bf16.msra.mxu0 %v345
        %408 = vmatprep.subr.bf16.mxu0 %v350
        %409 = vmatpush1.bf16.msra.mxu0 %v349
        %410 = vmatprep.subr.bf16.mxu0 %v390
        %411 = vmatpush1.bf16.msra.mxu0 %v387
        %412 = vmatprep.subr.bf16.mxu0 0
        %413 = vmatpush1.bf16.msra.mxu0 0
        %414 = vmatprep.subr.bf16.mxu0 0
        %415 = vmatpush1.bf16.msra.mxu0 0
        %416 = vmatprep.subr.bf16.mxu0 0
        %417 = vmatpush1.bf16.msra.mxu0 0
        %418 = vmatprep.subr.bf16.mxu0 0
        %419 = vmatpush1.bf16.msra.mxu0 0
        %420 = vmatprep.subr.bf16.mxu0 0
        %421 = vmatpush1.bf16.msra.mxu0 0
        %422 = vmatprep.subr.bf16.mxu0 0
        %423 = vmatpush1.bf16.msra.mxu0 0
        %424 = vmatprep.subr.bf16.mxu0 0
        %425 = vmatpush1.bf16.msra.mxu0 0
        %426 = vmatprep.subr.bf16.mxu0 0
        %427 = vmatpush1.bf16.msra.mxu0 0
        %428 = vmatprep.subr.bf16.mxu0 0
        %429 = vmatpush1.bf16.msra.mxu0 0
        %430 = vmatprep.mubr.bf16.mxu0 0
        %431 = vmatmul.mubr.bf16.gmra.mrb[0].mxu0 %v383
        %v432 = vpop.f32.mrb[0].mxu0
        %v433 = vadd.f32 0.0, %v432
        %v434 = vpop.f32.mrb[0].mxu0
        %v435 = vadd.f32 0.0, %v434
        %v436 = vpop.f32.mrb[0].mxu0
        %v437 = vpop.f32.mrb[0].mxu0
        %438 = vdwg.mxu0
        %439 = vmatprep.subr.bf16.mxu0 %v332
        %440 = vmatpush1.bf16.msra.mxu0 %v331
        %441 = vmatprep.subr.bf16.mxu0 %v336
        %442 = vmatpush1.bf16.msra.mxu0 %v335
        %443 = vmatprep.subr.bf16.mxu0 %v340
        %444 = vmatpush1.bf16.msra.mxu0 %v339
        %445 = vmatprep.subr.bf16.mxu0 %v344
        %446 = vmatpush1.bf16.msra.mxu0 %v343
        %447 = vmatprep.subr.bf16.mxu0 %v348
        %448 = vmatpush1.bf16.msra.mxu0 %v347
        %449 = vmatprep.subr.bf16.mxu0 %v352
        %450 = vmatpush1.bf16.msra.mxu0 %v351
        %451 = vmatprep.subr.bf16.mxu0 %v396
        %452 = vmatpush1.bf16.msra.mxu0 %v393
        %453 = vmatprep.subr.bf16.mxu0 0
        %454 = vmatpush1.bf16.msra.mxu0 0
        %455 = vmatprep.subr.bf16.mxu0 0
        %456 = vmatpush1.bf16.msra.mxu0 0
        %457 = vmatprep.subr.bf16.mxu0 0
        %458 = vmatpush1.bf16.msra.mxu0 0
        %459 = vmatprep.subr.bf16.mxu0 0
        %460 = vmatpush1.bf16.msra.mxu0 0
        %461 = vmatprep.subr.bf16.mxu0 0
        %462 = vmatpush1.bf16.msra.mxu0 0
        %463 = vmatprep.subr.bf16.mxu0 0
        %464 = vmatpush1.bf16.msra.mxu0 0
        %465 = vmatprep.subr.bf16.mxu0 0
        %466 = vmatpush1.bf16.msra.mxu0 0
        %467 = vmatprep.subr.bf16.mxu0 0
        %468 = vmatpush1.bf16.msra.mxu0 0
        %469 = vmatprep.subr.bf16.mxu0 0
        %470 = vmatpush1.bf16.msra.mxu0 0
        %471 = vmatprep.mubr.bf16.mxu0 0
        %472 = vmatmul.mubr.bf16.gmra.mrb[0].mxu0 %v383
        %v473 = vpop.f32.mrb[0].mxu0
        %v474 = vadd.f32 0.0, %v473
        %v475 = vpop.f32.mrb[0].mxu0
        %v476 = vadd.f32 0.0, %v475
        %v477 = vpop.f32.mrb[0].mxu0
        %v478 = vpop.f32.mrb[0].mxu0
        %479 = vdwg.mxu0
        %480 = vst [vmem:[%s205] sm:$0xff] %v433
        %481 = vst [vmem:[%s205 + $0x8] sm:$0xff] %v435
        %482 = vst [vmem:[%s205 + $0x10] sm:$0xff] %v474
        %483 = vst [vmem:[%s205 + $0x18] sm:$0xff] %v476
        %v484 = vadd.f32 %v433, %v435
        %v485 = vadd.f32 %v484, %v474
        %v486 = vadd.f32 %v485, %v476
        %487 = vadd.xlane.f32.xlu0 %v486
        %v488 = vpop.xlane.xlu0 %487
        %v489 = vmul.f32 %v433, %v433
        %v490 = vmul.f32 %v435, %v435
        %v491 = vmul.f32 %v474, %v474
        %v492 = vmul.f32 %v476, %v476
        %v493 = vadd.f32 %v489, %v490
        %v494 = vadd.f32 %v493, %v491
        %v495 = vadd.f32 %v494, %v492
        %496 = vadd.xlane.f32.xlu0 %v495
        %v497 = vpop.xlane.xlu0 %496
        %vm498 = vcmask 7168
        %v499 = vsel %vm498, %v488, %v497
        %vm500 = vcmask 15360
        %501 = vst.msk [vmem:[%s212] sm:$0xff] %vm500, %v499
        %s502 = sand.u32 %s80, 1
        %s503 = scalar_lea.sflag [#allocation4], %s502
        %s504 = sand.u32 %s80, 1
        %s505 = smul.addr %s504, 32
        %s506 = scalar_lea.vmem [#allocation7], %s505
        %s507 = sand.u32 %s106, 1
        %s508 = scalar_lea.sflag [#allocation9], %s507
        %s509 = sand.u32 %s106, 1
        %s510 = smul.addr %s509, 8
        %s511 = scalar_lea.vmem [#allocation8], %s510
        // Predicated region
        $region37: #{basic_block_forward.4} parent=27 // pred_check
          %p512 = pneg %p90
        $region38: #{basic_block_forward.4} parent=27 // pred_check_branch
          %514 = sbr.rel (%p512) target = $region40
        $region39: #{basic_block_forward.4} parent=27 // pred_region
          %s515 = smul.u32 4, %s25
          %s517 = ssub.s32 512, 512
          %518 = vsyncadd %s503, %s517
          %s519 = smul.addr %s515, 128
          %s520 = scalar_lea.hbm %s2, %s519
          %s522 = sshll.u32 %s506, 4
          %s523 = int_to_ptr.vmem [resolvable:$true] %s522
          %525 = dma.vmem_to_hbm [thread:$0]  %s523, 512, %s520, %s503
        $region40: #{basic_block_forward.4} parent=27 // pred_fallthru
          _
        // Predicated region
        $region41: #{basic_block_forward.4} parent=27 // pred_check
          %p526 = pneg %p116
        $region42: #{basic_block_forward.4} parent=27 // pred_check_branch
          %528 = sbr.rel (%p526) target = $region44
        $region43: #{basic_block_forward.4} parent=27 // pred_region
          %s530 = ssub.s32 128, 128
          %531 = vsyncadd %s508, %s530
          %s532 = smul.addr %s25, 128
          %s533 = scalar_lea.hbm %s3, %s532
          %s535 = sshll.u32 %s511, 4
          %s536 = int_to_ptr.vmem [resolvable:$true] %s535
          %538 = dma.vmem_to_hbm [thread:$0]  %s536, 128, %s533, %s508
        $region44: #{basic_block_forward.4} parent=27 // pred_fallthru
          _
      $region28: #{basic_block_forward.4} parent=5 // pred_fallthru
        _
      %p539 = scmp.le.s32.totalorder 2, %s20
      // Predicated region
      $region45: #{basic_block_forward.4} parent=5 // pred_check
        %p540 = pneg %p539
      $region46: #{basic_block_forward.4} parent=5 // pred_check_branch
        %542 = sbr.rel (%p540) target = $region48
      $region47: #{basic_block_forward.4} parent=5 // pred_region
        %s543 = ssub.s32 %s20, 2
        // Predicated region
        $region49: #{basic_block_forward.4} parent=47 // pred_check
          %p544 = pneg %p96
        $region50: #{basic_block_forward.4} parent=47 // pred_check_branch
          %546 = sbr.rel (%p544) target = $region52
        $region51: #{basic_block_forward.4} parent=47 // pred_region
          %s547 = sand.u32 %s81, 1
          %s548 = scalar_lea.sflag [#allocation4], %s547
          %s549 = sand.u32 %s81, 1
          %s550 = smul.addr %s549, 32
          %s551 = scalar_lea.vmem [#allocation7], %s550
          %552 = dma.done %s548, 512
        $region52: #{basic_block_forward.4} parent=47 // pred_fallthru
          _
        // Predicated region
        $region53: #{basic_block_forward.4} parent=47 // pred_check
          %p553 = pneg %p122
        $region54: #{basic_block_forward.4} parent=47 // pred_check_branch
          %555 = sbr.rel (%p553) target = $region56
        $region55: #{basic_block_forward.4} parent=47 // pred_region
          %s556 = sand.u32 %s107, 1
          %s557 = scalar_lea.sflag [#allocation9], %s556
          %s558 = sand.u32 %s107, 1
          %s559 = smul.addr %s558, 8
          %s560 = scalar_lea.vmem [#allocation8], %s559
          %561 = dma.done %s557, 128
        $region56: #{basic_block_forward.4} parent=47 // pred_fallthru
          _
      $region48: #{basic_block_forward.4} parent=5 // pred_fallthru
        _
    $region6: #{basic_block_forward.4} parent=1 // loop_footer
      %s24 = sadd.s32 1, %s20
    $region7: #{basic_block_forward.4} parent=1 // loop_footer_branch
      %19 = sbr.rel target = $region3
    $region8: #{basic_block_forward.4} parent=1 // loop_exit
      _
    %562 = vsyncpa [#allocation3], 1
    %s563 = scalar_lea.sflag [#allocation3], 1
    %564 = vsyncpa %s563, 1
    %565 = vsyncpa [#allocation6], 1
    %566 = vsyncpa [#allocation4], 1
    %s567 = scalar_lea.sflag [#allocation4], 1
    %568 = vsyncpa %s567, 1
    %569 = vsyncpa [#allocation9], 1
    %s570 = scalar_lea.sflag [#allocation9], 1
    %571 = vsyncpa %s570, 1

// kernel: basic_block_forward.7
$region0: #{basic_block_forward.7}
  #allocation0 [shape = 'u32[]', space=smem, size = 0x4, offset = 0x4, fixed_abs, tag = 'smem constant byte address 0x4 - core index']
  #allocation1 [shape = 'u32[144,128]{1,0:T(1,128)}', space=vmem, size = 0x12000, scoped, tag = 'internal scratch']
  %s0 = inlined_call_operand.hbm [shape: f32[8,1024], index: 0, kind: input, shape index: {}]
  %s1 = inlined_call_operand.hbm [shape: f32[8,1], index: 1, kind: input, shape index: {}]
  %s2 = inlined_call_operand.hbm [shape: f32[8,1], index: 2, kind: input, shape index: {}]
  %s3 = inlined_call_operand.hbm [shape: f32[8,1024], index: 3, kind: input, shape index: {}]
  %s4 = inlined_call_operand.hbm [shape: f32[8,1024], index: 4, kind: output, shape index: {}]
  %s5 = sld [smem:[#allocation0]]
  $region65: #{basic_block_forward.7} parent=0
    _
  %s7 = ssub.s32 1, %s5
  %s8 = scalar_select 0, %s7, %s5
  $region1: #{basic_block_forward.7} parent=0
    #allocation2 [shape = 'u8[32768]{0}', space=vmem, size = 0x8000, scoped, tag = 'input window, operand 0']
    #allocation3 [shape = 's32[2]{0}', space=sflag, size = 0x8, scoped, tag = 'scoped memory for basic_block_forward.7']
    #allocation4 [shape = 's32[2]{0}', space=sflag, size = 0x8, scoped, tag = 'scoped memory for basic_block_forward.7']
    #allocation5 [shape = 'u8[4096]{0}', space=vmem, size = 0x1000, scoped, tag = 'input window, operand 1, single buffered']
    #allocation6 [shape = 's32[1]{0}', space=sflag, size = 0x4, scoped, tag = 'scoped memory for basic_block_forward.7']
    #allocation7 [shape = 'u8[4096]{0}', space=vmem, size = 0x1000, scoped, tag = 'input window, operand 2, single buffered']
    #allocation8 [shape = 'u8[32768]{0}', space=vmem, size = 0x8000, scoped, tag = 'input window, operand 3']
    #allocation9 [shape = 's32[2]{0}', space=sflag, size = 0x8, scoped, tag = 'scoped memory for basic_block_forward.7']
    #allocation10 [shape = 'u8[32768]{0}', space=vmem, size = 0x8000, scoped, tag = 'output window, operand 0']
    %9 = vsyncpa [#allocation3], 0
    %s10 = scalar_lea.sflag [#allocation3], 1
    %11 = vsyncpa %s10, 0
    %12 = vsyncpa [#allocation6], 0
    %13 = vsyncpa [#allocation9], 0
    %s14 = scalar_lea.sflag [#allocation9], 1
    %15 = vsyncpa %s14, 0
    %16 = vsyncpa [#allocation4], 0
    %s17 = scalar_lea.sflag [#allocation4], 1
    %18 = vsyncpa %s17, 0
    loop: start=0, step=1, limit=4
    $region2: #{basic_block_forward.7} parent=1 // loop_pre_header
      _
    $region3: #{basic_block_forward.7} parent=1 // loop_header
      %s20 = sphi 0, %s24
      %p21 = scmp.ge.s32.totalorder %s20, 4
      %s30 = sphi 0, %s32
      %s33 = sphi 0, %s30
      %s34 = sphi 0, %s33
      %s50 = sphi 0, %s34
      %s54 = sphi 0, %s54
      %s56 = sphi 0, %s54
      %s57 = sphi 0, %s56
      %s71 = sphi 0, %s57
      %s75 = sphi 0, %s75
      %s77 = sphi 0, %s75
      %s78 = sphi 0, %s77
      %s92 = sphi 0, %s78
      %s98 = sphi 0, %s100
      %s101 = sphi 0, %s98
      %s102 = sphi 0, %s101
      %s118 = sphi 0, %s102
      %s124 = sphi 0, %s126
      %s127 = sphi 0, %s124
      %s128 = sphi 0, %s127
      %s144 = sphi 0, %s128
    $region4: #{basic_block_forward.7} parent=1 // loop_header_branch
      %23 = sbr.rel (%p21) target = $region8
    $region5: #{basic_block_forward.7} parent=1 // loop_body
      %s25 = ssub.s32 %s20, 1
      %s26 = ssub.s32 %s20, 2
      %s27 = sadd.s32 %s20, 1
      %s28 = ssub.s32 %s20, %s27
      %p29 = scmp.eq.s32.totalorder %s28, 0
      %s31 = sadd.s32 %s30, 1
      %s32 = scalar_select %p29, %s30, %s31
      %p35 = pneg %p29
      %p36 = scmp.eq.s32.totalorder %s20, 1
      %p37 = por %p35, %p36
      %p38 = scmp.ne.s32.totalorder %s30, %s33
      %p39 = scmp.eq.s32.totalorder %s20, 0
      %p40 = por %p38, %p39
      %p41 = scmp.ne.s32.totalorder %s30, %s33
      %p42 = scmp.eq.s32.totalorder %s25, 1
      %p43 = por %p41, %p42
      %p44 = scmp.ne.s32.totalorder %s33, %s34
      %p45 = scmp.eq.s32.totalorder %s25, 0
      %p46 = por %p44, %p45
      %p47 = scmp.ne.s32.totalorder %s33, %s34
      %p48 = scmp.eq.s32.totalorder %s26, 1
      %p49 = por %p47, %p48
      %p51 = scmp.ne.s32.totalorder %s34, %s50
      %p52 = scmp.eq.s32.totalorder %s26, 0
      %p53 = por %p51, %p52
      %s55 = sadd.s32 %s54, 1
      %p58 = scmp.eq.s32.totalorder %s20, 1
      %p59 = scmp.ne.s32.totalorder %s54, %s56
      %p60 = scmp.eq.s32.totalorder %s20, 0
      %p61 = por %p59, %p60
      %p62 = scmp.ne.s32.totalorder %s54, %s56
      %p63 = scmp.eq.s32.totalorder %s25, 1
      %p64 = por %p62, %p63
      %p65 = scmp.ne.s32.totalorder %s56, %s57
      %p66 = scmp.eq.s32.totalorder %s25, 0
      %p67 = por %p65, %p66
      %p68 = scmp.ne.s32.totalorder %s56, %s57
      %p69 = scmp.eq.s32.totalorder %s26, 1
      %p70 = por %p68, %p69
      %p72 = scmp.ne.s32.totalorder %s57, %s71
      %p73 = scmp.eq.s32.totalorder %s26, 0
      %p74 = por %p72, %p73
      %s76 = sadd.s32 %s75, 1
      %p79 = scmp.eq.s32.totalorder %s20, 1
      %p80 = scmp.ne.s32.totalorder %s75, %s77
      %p81 = scmp.eq.s32.totalorder %s20, 0
      %p82 = por %p80, %p81
      %p83 = scmp.ne.s32.totalorder %s75, %s77
      %p84 = scmp.eq.s32.totalorder %s25, 1
      %p85 = por %p83, %p84
      %p86 = scmp.ne.s32.totalorder %s77, %s78
      %p87 = scmp.eq.s32.totalorder %s25, 0
      %p88 = por %p86, %p87
      %p89 = scmp.ne.s32.totalorder %s77, %s78
      %p90 = scmp.eq.s32.totalorder %s26, 1
      %p91 = por %p89, %p90
      %p93 = scmp.ne.s32.totalorder %s78, %s92
      %p94 = scmp.eq.s32.totalorder %s26, 0
      %p95 = por %p93, %p94
      %s96 = ssub.s32 %s20, %s27
      %p97 = scmp.eq.s32.totalorder %s96, 0
      %s99 = sadd.s32 %s98, 1
      %s100 = scalar_select %p97, %s98, %s99
      %p103 = pneg %p97
      %p104 = scmp.eq.s32.totalorder %s20, 1
      %p105 = por %p103, %p104
      %p106 = scmp.ne.s32.totalorder %s98, %s101
      %p107 = scmp.eq.s32.totalorder %s20, 0
      %p108 = por %p106, %p107
      %p109 = scmp.ne.s32.totalorder %s98, %s101
      %p110 = scmp.eq.s32.totalorder %s25, 1
      %p111 = por %p109, %p110
      %p112 = scmp.ne.s32.totalorder %s101, %s102
      %p113 = scmp.eq.s32.totalorder %s25, 0
      %p114 = por %p112, %p113
      %p115 = scmp.ne.s32.totalorder %s101, %s102
      %p116 = scmp.eq.s32.totalorder %s26, 1
      %p117 = por %p115, %p116
      %p119 = scmp.ne.s32.totalorder %s102, %s118
      %p120 = scmp.eq.s32.totalorder %s26, 0
      %p121 = por %p119, %p120
      %s122 = ssub.s32 %s20, %s27
      %p123 = scmp.eq.s32.totalorder %s122, 0
      %s125 = sadd.s32 %s124, 1
      %s126 = scalar_select %p123, %s124, %s125
      %p129 = pneg %p123
      %p130 = scmp.eq.s32.totalorder %s20, 1
      %p131 = por %p129, %p130
      %p132 = scmp.ne.s32.totalorder %s124, %s127
      %p133 = scmp.eq.s32.totalorder %s20, 0
      %p134 = por %p132, %p133
      %p135 = scmp.ne.s32.totalorder %s124, %s127
      %p136 = scmp.eq.s32.totalorder %s25, 1
      %p137 = por %p135, %p136
      %p138 = scmp.ne.s32.totalorder %s127, %s128
      %p139 = scmp.eq.s32.totalorder %s25, 0
      %p140 = por %p138, %p139
      %p141 = scmp.ne.s32.totalorder %s127, %s128
      %p142 = scmp.eq.s32.totalorder %s26, 1
      %p143 = por %p141, %p142
      %p145 = scmp.ne.s32.totalorder %s128, %s144
      %p146 = scmp.eq.s32.totalorder %s26, 0
      %p147 = por %p145, %p146
      %p148 = scmp.le.s32.totalorder 1, %s20
      %p149 = scmp.lt.s32.totalorder %s20, 3
      %p150 = pnand %p148, %p149
      %p151 = pneg %p150
      // Predicated region
      $region9: #{basic_block_forward.7} parent=5 // pred_check
        _
      $region10: #{basic_block_forward.7} parent=5 // pred_check_branch
        %153 = sbr.rel (%p150) target = $region12
      $region11: #{basic_block_forward.7} parent=5 // pred_region
        %s154 = ssub.s32 %s20, 1
        // Predicated region
        $region13: #{basic_block_forward.7} parent=11 // pred_check
          %p155 = pneg %p67
        $region14: #{basic_block_forward.7} parent=11 // pred_check_branch
          %157 = sbr.rel (%p155) target = $region16
        $region15: #{basic_block_forward.7} parent=11 // pred_region
          %s159 = ssub.s32 128, 128
          %160 = vsyncadd [#allocation6], %s159
          %s162 = sshll.u32 [#allocation5], 4
          %s163 = int_to_ptr.vmem [resolvable:$true] %s162
          %165 = dma.hbm_to_vmem [thread:$0]  %s1, 128, %s163, [#allocation6]
        $region16: #{basic_block_forward.7} parent=11 // pred_fallthru
          _
        // Predicated region
        $region17: #{basic_block_forward.7} parent=11 // pred_check
          %p166 = pneg %p88
        $region18: #{basic_block_forward.7} parent=11 // pred_check_branch
          %168 = sbr.rel (%p166) target = $region20
        $region19: #{basic_block_forward.7} parent=11 // pred_region
          %s170 = ssub.s32 128, 128
          %171 = vsyncadd [#allocation6], %s170
          %s173 = sshll.u32 [#allocation7], 4
          %s174 = int_to_ptr.vmem [resolvable:$true] %s173
          %176 = dma.hbm_to_vmem [thread:$0]  %s2, 128, %s174, [#allocation6]
        $region20: #{basic_block_forward.7} parent=11 // pred_fallthru
          _
      $region12: #{basic_block_forward.7} parent=5 // pred_fallthru
        _
      %p177 = scmp.lt.s32.totalorder %s20, 2
      // Predicated region
      $region21: #{basic_block_forward.7} parent=5 // pred_check
        %p178 = pneg %p177
      $region22: #{basic_block_forward.7} parent=5 // pred_check_branch
        %180 = sbr.rel (%p178) target = $region24
      $region23: #{basic_block_forward.7} parent=5 // pred_region
        // Predicated region
        $region25: #{basic_block_forward.7} parent=23 // pred_check
          %p181 = pneg %p40
        $region26: #{basic_block_forward.7} parent=23 // pred_check_branch
          %183 = sbr.rel (%p181) target = $region28
        $region27: #{basic_block_forward.7} parent=23 // pred_region
          %s184 = sand.u32 %s30, 1
          %s185 = scalar_lea.sflag [#allocation3], %s184
          %s186 = sand.u32 %s30, 1
          %s187 = smul.addr %s186, 32
          %s188 = scalar_lea.vmem [#allocation2], %s187
          %s189 = smul.u32 4, %s20
          %s191 = ssub.s32 512, 512
          %192 = vsyncadd %s185, %s191
          %s193 = smul.addr %s189, 128
          %s194 = scalar_lea.hbm %s0, %s193
          %s196 = sshll.u32 %s188, 4
          %s197 = int_to_ptr.vmem [resolvable:$true] %s196
          %199 = dma.hbm_to_vmem [thread:$0]  %s194, 512, %s197, %s185
        $region28: #{basic_block_forward.7} parent=23 // pred_fallthru
          _
        // Predicated region
        $region29: #{basic_block_forward.7} parent=23 // pred_check
          %p200 = pneg %p108
        $region30: #{basic_block_forward.7} parent=23 // pred_check_branch
          %202 = sbr.rel (%p200) target = $region32
        $region31: #{basic_block_forward.7} parent=23 // pred_region
          %s203 = sand.u32 %s98, 1
          %s204 = scalar_lea.sflag [#allocation9], %s203
          %s205 = sand.u32 %s98, 1
          %s206 = smul.addr %s205, 32
          %s207 = scalar_lea.vmem [#allocation8], %s206
          %s208 = smul.u32 4, %s20
          %s210 = ssub.s32 512, 512
          %211 = vsyncadd %s204, %s210
          %s212 = smul.addr %s208, 128
          %s213 = scalar_lea.hbm %s3, %s212
          %s215 = sshll.u32 %s207, 4
          %s216 = int_to_ptr.vmem [resolvable:$true] %s215
          %218 = dma.hbm_to_vmem [thread:$0]  %s213, 512, %s216, %s204
        $region32: #{basic_block_forward.7} parent=23 // pred_fallthru
          _
      $region24: #{basic_block_forward.7} parent=5 // pred_fallthru
        _
      %p219 = scmp.le.s32.totalorder 1, %s20
      %p220 = scmp.lt.s32.totalorder %s20, 3
      %p221 = pnand %p219, %p220
      %p222 = pneg %p221
      // Predicated region
      $region33: #{basic_block_forward.7} parent=5 // pred_check
        _
      $region34: #{basic_block_forward.7} parent=5 // pred_check_branch
        %224 = sbr.rel (%p221) target = $region36
      $region35: #{basic_block_forward.7} parent=5 // pred_region
        %s225 = ssub.s32 %s20, 1
        %s226 = sand.u32 %s33, 1
        %s227 = scalar_lea.sflag [#allocation3], %s226
        %s228 = sand.u32 %s33, 1
        %s229 = smul.addr %s228, 32
        %s230 = scalar_lea.vmem [#allocation2], %s229
        // Predicated region
        $region37: #{basic_block_forward.7} parent=35 // pred_check
          %p231 = pneg %p46
        $region38: #{basic_block_forward.7} parent=35 // pred_check_branch
          %233 = sbr.rel (%p231) target = $region40
        $region39: #{basic_block_forward.7} parent=35 // pred_region
          %234 = dma.done %s227, 512
        $region40: #{basic_block_forward.7} parent=35 // pred_fallthru
          _
        // Predicated region
        $region41: #{basic_block_forward.7} parent=35 // pred_check
          %p235 = pneg %p67
        $region42: #{basic_block_forward.7} parent=35 // pred_check_branch
          %237 = sbr.rel (%p235) target = $region44
        $region43: #{basic_block_forward.7} parent=35 // pred_region
          %238 = dma.done [#allocation6], 128
        $region44: #{basic_block_forward.7} parent=35 // pred_fallthru
          _
        // Predicated region
        $region45: #{basic_block_forward.7} parent=35 // pred_check
          %p239 = pneg %p88
        $region46: #{basic_block_forward.7} parent=35 // pred_check_branch
          %241 = sbr.rel (%p239) target = $region48
        $region47: #{basic_block_forward.7} parent=35 // pred_region
          %242 = dma.done [#allocation6], 128
        $region48: #{basic_block_forward.7} parent=35 // pred_fallthru
          _
        %s243 = sand.u32 %s101, 1
        %s244 = scalar_lea.sflag [#allocation9], %s243
        %s245 = sand.u32 %s101, 1
        %s246 = smul.addr %s245, 32
        %s247 = scalar_lea.vmem [#allocation8], %s246
        // Predicated region
        $region49: #{basic_block_forward.7} parent=35 // pred_check
          %p248 = pneg %p114
        $region50: #{basic_block_forward.7} parent=35 // pred_check_branch
          %250 = sbr.rel (%p248) target = $region52
        $region51: #{basic_block_forward.7} parent=35 // pred_region
          %251 = dma.done %s244, 512
        $region52: #{basic_block_forward.7} parent=35 // pred_fallthru
          _
        %s252 = sand.u32 %s33, 1
        %s253 = scalar_lea.sflag [#allocation3], %s252
        %s254 = sand.u32 %s33, 1
        %s255 = smul.addr %s254, 32
        %s256 = scalar_lea.vmem [#allocation2], %s255
        %p257 = pneg %p46
        %p258 = pneg %p43
        %p259 = pneg %p67
        %p260 = pneg %p64
        %p261 = pneg %p88
        %p262 = pneg %p85
        %s263 = sand.u32 %s101, 1
        %s264 = scalar_lea.sflag [#allocation9], %s263
        %s265 = sand.u32 %s101, 1
        %s266 = smul.addr %s265, 32
        %s267 = scalar_lea.vmem [#allocation8], %s266
        %p268 = pneg %p114
        %p269 = pneg %p111
        %p270 = pneg %p140
        %p271 = pneg %p137
        %s272 = sand.u32 %s127, 1
        %s273 = scalar_lea.sflag [#allocation4], %s272
        %s274 = sand.u32 %s127, 1
        %s275 = smul.addr %s274, 32
        %s276 = scalar_lea.vmem [#allocation10], %s275
        %s277 = smul.u32 4, %s25
        %s278 = smul.u32 4, %s25
        %s279 = smul.u32 4, %s25
        %v280 = vld [vmem:[%s230] sm:$0xff]
        %v281 = vld [vmem:[%s230 + $0x8] sm:$0xff]
        %v282 = vld [vmem:[%s230 + $0x10] sm:$0xff]
        %v283 = vld [vmem:[%s230 + $0x18] sm:$0xff]
        %v284 = vld [vmem:[#allocation5] sm:$0xff]
        %286 = vset.pattern.permute.xlu0 0
        %287 = vperm.xlu0 %286, %v284
        %v288 = vpop.permute.xlu0 %287
        %v290 = vmul.f32 %v280, %v288
        %v291 = vmul.f32 %v281, %v288
        %v292 = vmul.f32 %v282, %v288
        %v293 = vmul.f32 %v283, %v288
        %v294 = vld [vmem:[#allocation7] sm:$0xff]
        %296 = vset.pattern.permute.xlu0 0
        %297 = vperm.xlu0 %296, %v294
        %v298 = vpop.permute.xlu0 %297
        %v300 = vadd.f32 %v290, %v298
        %v301 = vadd.f32 %v291, %v298
        %v302 = vadd.f32 %v292, %v298
        %v303 = vadd.f32 %v293, %v298
        %v304 = vld [vmem:[%s247] sm:$0xff]
        %v305 = vld [vmem:[%s247 + $0x8] sm:$0xff]
        %v306 = vld [vmem:[%s247 + $0x10] sm:$0xff]
        %v307 = vld [vmem:[%s247 + $0x18] sm:$0xff]
        %v308 = vadd.f32 %v300, %v304
        %v309 = vadd.f32 %v301, %v305
        %v310 = vadd.f32 %v302, %v306
        %v311 = vadd.f32 %v303, %v307
        %v312 = vmax.f32 %v308, 0.0
        %v313 = vmax.f32 %v309, 0.0
        %v314 = vmax.f32 %v310, 0.0
        %v315 = vmax.f32 %v311, 0.0
        %316 = vst [vmem:[%s276] sm:$0xff] %v312
        %317 = vst [vmem:[%s276 + $0x8] sm:$0xff] %v313
        %318 = vst [vmem:[%s276 + $0x10] sm:$0xff] %v314
        %319 = vst [vmem:[%s276 + $0x18] sm:$0xff] %v315
        %s320 = sand.u32 %s127, 1
        %s321 = scalar_lea.sflag [#allocation4], %s320
        %s322 = sand.u32 %s127, 1
        %s323 = smul.addr %s322, 32
        %s324 = scalar_lea.vmem [#allocation10], %s323
        // Predicated region
        $region53: #{basic_block_forward.7} parent=35 // pred_check
          %p325 = pneg %p137
        $region54: #{basic_block_forward.7} parent=35 // pred_check_branch
          %327 = sbr.rel (%p325) target = $region56
        $region55: #{basic_block_forward.7} parent=35 // pred_region
          %s328 = smul.u32 4, %s25
          %s330 = ssub.s32 512, 512
          %331 = vsyncadd %s321, %s330
          %s332 = smul.addr %s328, 128
          %s333 = scalar_lea.hbm %s4, %s332
          %s335 = sshll.u32 %s324, 4
          %s336 = int_to_ptr.vmem [resolvable:$true] %s335
          %338 = dma.vmem_to_hbm [thread:$0]  %s336, 512, %s333, %s321
        $region56: #{basic_block_forward.7} parent=35 // pred_fallthru
          _
      $region36: #{basic_block_forward.7} parent=5 // pred_fallthru
        _
      %p339 = scmp.le.s32.totalorder 2, %s20
      // Predicated region
      $region57: #{basic_block_forward.7} parent=5 // pred_check
        %p340 = pneg %p339
      $region58: #{basic_block_forward.7} parent=5 // pred_check_branch
        %342 = sbr.rel (%p340) target = $region60
      $region59: #{basic_block_forward.7} parent=5 // pred_region
        %s343 = ssub.s32 %s20, 2
        // Predicated region
        $region61: #{basic_block_forward.7} parent=59 // pred_check
          %p344 = pneg %p143
        $region62: #{basic_block_forward.7} parent=59 // pred_check_branch
          %346 = sbr.rel (%p344) target = $region64
        $region63: #{basic_block_forward.7} parent=59 // pred_region
          %s347 = sand.u32 %s128, 1
          %s348 = scalar_lea.sflag [#allocation4], %s347
          %s349 = sand.u32 %s128, 1
          %s350 = smul.addr %s349, 32
          %s351 = scalar_lea.vmem [#allocation10], %s350
          %352 = dma.done %s348, 512
        $region64: #{basic_block_forward.7} parent=59 // pred_fallthru
          _
      $region60: #{basic_block_forward.7} parent=5 // pred_fallthru
        _
    $region6: #{basic_block_forward.7} parent=1 // loop_footer
      %s24 = sadd.s32 1, %s20
    $region7: #{basic_block_forward.7} parent=1 // loop_footer_branch
      %19 = sbr.rel target = $region3
    $region8: #{basic_block_forward.7} parent=1 // loop_exit
      _
    %353 = vsyncpa [#allocation3], 1
    %s354 = scalar_lea.sflag [#allocation3], 1
    %355 = vsyncpa %s354, 1
    %356 = vsyncpa [#allocation6], 1
    %357 = vsyncpa [#allocation9], 1
    %s358 = scalar_lea.sflag [#allocation9], 1
    %359 = vsyncpa %s358, 1
    %360 = vsyncpa [#allocation4], 1
    %s361 = scalar_lea.sflag [#allocation4], 1
    %362 = vsyncpa %s361, 1

</llo_original>
